<compile_context>
chip_gen: v7x
topology: tpu7x:2x2x1
jax: 0.10.0
libtpu: 0.0.40
codegen_flags: <defaults>
</compile_context>

<pallas_src>
import functools
import math

import jax
import jax.numpy as jnp
import numpy as np
from jax import lax
from jax.experimental import pallas as pl
from jax.experimental.pallas import tpu as pltpu


@functools.lru_cache(maxsize=None)
def _vmem_limit_bytes():
    """Chip-aware scoped-VMEM budget (~3/4 of physical, capped at 96 MiB)."""
    cap = 128 * 1024 * 1024
    try:
        info = pltpu.get_tpu_info()
        cap = int(getattr(info, "vmem_capacity_bytes", cap))
    except Exception:
        pass
    return max(32 * 1024 * 1024, min(3 * cap // 4, 96 * 1024 * 1024))


def _pick_tile(dim, target):
    """Largest power-of-two tile <= target dividing dim (or dim if small)."""
    if dim <= target:
        return dim
    t = target
    while t > 1 and dim % t:
        t //= 2
    return t


# ----------------------------- tiled matmul ---------------------------------

def _matmul_kernel(x_ref, w_ref, o_ref, acc_ref, *, mxu_dtype):
    @pl.when(pl.program_id(2) == 0)
    def _():
        acc_ref[...] = jnp.zeros_like(acc_ref)

    acc_ref[...] += jnp.dot(
        x_ref[...].astype(mxu_dtype),
        w_ref[...].astype(mxu_dtype),
        preferred_element_type=jnp.float32,
    )

    @pl.when(pl.program_id(2) == pl.num_programs(2) - 1)
    def _():
        o_ref[...] = acc_ref[...].astype(o_ref.dtype)


def matmul(x, w, *, out_dtype=None, tm=512, tn=512, tk=512,
           mxu_dtype=jnp.bfloat16):
    """x: (M, K), w: (K, N)."""
    M, K = x.shape
    K2, N = w.shape
    assert K == K2
    out_dtype = out_dtype or x.dtype
    tm, tn, tk = _pick_tile(M, tm), _pick_tile(N, tn), _pick_tile(K, tk)
    kern = functools.partial(_matmul_kernel, mxu_dtype=mxu_dtype)
    return pl.pallas_call(
        kern,
        out_shape=jax.ShapeDtypeStruct((M, N), out_dtype),
        grid=(M // tm, N // tn, K // tk),
        in_specs=[
            pl.BlockSpec((tm, tk), lambda i, j, k: (i, k)),
            pl.BlockSpec((tk, tn), lambda i, j, k: (k, j)),
        ],
        out_specs=pl.BlockSpec((tm, tn), lambda i, j, k: (i, j)),
        scratch_shapes=[pltpu.VMEM((tm, tn), jnp.float32)],
        compiler_params=pltpu.CompilerParams(
            dimension_semantics=("parallel", "parallel", "arbitrary"),
            vmem_limit_bytes=_vmem_limit_bytes(),
        ),
    )(x, w)


# --------------------- output projection (head-major lhs) -------------------

def _oproj_kernel(x_ref, w_ref, o_ref, acc_ref, *, hk, head_dim, mxu_dtype):
    @pl.when(pl.program_id(2) == 0)
    def _():
        acc_ref[...] = jnp.zeros_like(acc_ref)

    for hi in range(hk):  # static unroll over heads of this K block
        acc_ref[...] += jnp.dot(
            x_ref[hi].astype(mxu_dtype),
            w_ref[hi * head_dim:(hi + 1) * head_dim, :].astype(mxu_dtype),
            preferred_element_type=jnp.float32,
        )

    @pl.when(pl.program_id(2) == pl.num_programs(2) - 1)
    def _():
        o_ref[...] = acc_ref[...].astype(o_ref.dtype)


def o_projection(attn_hmd, w, *, out_dtype=jnp.float32, tm=512, tn=512,
                 mxu_dtype=jnp.bfloat16):
    """attn_hmd: (nH, M, D) head-major attention output (logical lhs (M, nH*D));
    w: (nH*D, N).  Reads the 3-D flash output directly -- no XLA transpose."""
    nH, M, D = attn_hmd.shape
    K, N = w.shape
    assert K == nH * D
    tm, tn = _pick_tile(M, tm), _pick_tile(N, tn)
    hk = math.gcd(nH, 4)  # heads folded into each K step
    kern = functools.partial(_oproj_kernel, hk=hk, head_dim=D,
                             mxu_dtype=mxu_dtype)
    return pl.pallas_call(
        kern,
        out_shape=jax.ShapeDtypeStruct((M, N), out_dtype),
        grid=(M // tm, N // tn, nH // hk),
        in_specs=[
            pl.BlockSpec((hk, tm, D), lambda i, j, k: (k, i, 0)),
            pl.BlockSpec((hk * D, tn), lambda i, j, k: (k, j)),
        ],
        out_specs=pl.BlockSpec((tm, tn), lambda i, j, k: (i, j)),
        scratch_shapes=[pltpu.VMEM((tm, tn), jnp.float32)],
        compiler_params=pltpu.CompilerParams(
            dimension_semantics=("parallel", "parallel", "arbitrary"),
            vmem_limit_bytes=_vmem_limit_bytes(),
        ),
    )(attn_hmd, w)


# -------------------------------- RoPE ---------------------------------------

def _rope_kernel(x_ref, cos_ref, ssin_ref, o_ref, *, half, scale):
    x = x_ref[...].astype(jnp.float32)                  # (ts, D)
    rot = pltpu.roll(x, shift=half, axis=1)             # [x2, x1] via XLU
    o_ref[0, 0] = ((x * cos_ref[...] + rot * ssin_ref[...]) * scale
                   ).astype(o_ref.dtype)


def rope_from_qkv(qkv, cos, ssin, *, batch, seq, n_heads, head_dim,
                  col_head_offset, scale=1.0, out_dtype=jnp.bfloat16, ts=256):
    """Apply RoPE to `n_heads` heads read straight out of the flat
    (B*S, n_cols*D) fused-projection buffer; write (B, n_heads, S, D)."""
    B, S, D = batch, seq, head_dim
    ts = _pick_tile(S, ts)
    sb = S // ts
    kern = functools.partial(_rope_kernel, half=D // 2, scale=scale)
    return pl.pallas_call(
        kern,
        out_shape=jax.ShapeDtypeStruct((B, n_heads, S, D), out_dtype),
        grid=(B, n_heads, sb),
        in_specs=[
            pl.BlockSpec((ts, D),
                         lambda b, h, s: (b * sb + s, col_head_offset + h)),
            pl.BlockSpec((ts, D), lambda b, h, s: (s, 0)),
            pl.BlockSpec((ts, D), lambda b, h, s: (s, 0)),
        ],
        out_specs=pl.BlockSpec((1, 1, ts, D), lambda b, h, s: (b, h, s, 0)),
        compiler_params=pltpu.CompilerParams(
            dimension_semantics=("parallel", "parallel", "parallel"),
            vmem_limit_bytes=_vmem_limit_bytes(),
        ),
    )(qkv, cos, ssin)


# ------------------------- causal flash attention ---------------------------

def _flash_kernel(q_ref, k_ref, v_ref, o_ref, m_scr, l_scr, acc_scr,
                  *, groups, tq, tk, mxu_dtype):
    qi = pl.program_id(2)
    ki = pl.program_id(3)

    @pl.when(ki == 0)
    def _():
        m_scr[...] = jnp.full_like(m_scr, -jnp.inf)
        l_scr[...] = jnp.zeros_like(l_scr)
        acc_scr[...] = jnp.zeros_like(acc_scr)

    # Causal block skip: only process blocks with at least one allowed entry.
    @pl.when(qi * tq + tq - 1 >= ki * tk)
    def _():
        k = k_ref[0, 0].astype(mxu_dtype)                 # (tk, D)
        v = v_ref[...].astype(mxu_dtype)                  # (tk, D), in-place V

        # In-kernel causal mask (no (S,S) mask streamed from HBM); shared by
        # every q head of the GQA group.
        q_pos = qi * tq + lax.broadcasted_iota(jnp.int32, (tq, tk), 0)
        k_pos = ki * tk + lax.broadcasted_iota(jnp.int32, (tq, tk), 1)
        allowed = q_pos >= k_pos                          # (tq, tk)

        for g in range(groups):                           # static unroll (GQA)
            q = q_ref[0, g].astype(mxu_dtype)             # (tq, D); 1/sqrt(D)
            s = lax.dot_general(                          # already folded in
                q, k, (((1,), (1,)), ((), ())),
                preferred_element_type=jnp.float32)       # (tq, tk)
            s = jnp.where(allowed, s, -jnp.inf)

            m_prev = m_scr[g]                             # (tq, 1)
            m_new = jnp.maximum(m_prev, jnp.max(s, axis=-1, keepdims=True))
            alpha = jnp.exp(m_prev - m_new)
            p = jnp.exp(s - m_new)
            l_scr[g] = alpha * l_scr[g] + jnp.sum(p, axis=-1, keepdims=True)
            acc_scr[g] = alpha * acc_scr[g] + jnp.dot(
                p.astype(mxu_dtype), v, preferred_element_type=jnp.float32)
            m_scr[g] = m_new

    @pl.when(ki == pl.num_programs(3) - 1)
    def _():
        for g in range(groups):
            inv_l = pl.reciprocal(l_scr[g], approx=True)  # EUP slot
            o_ref[g] = (acc_scr[g] * inv_l).astype(o_ref.dtype)


def flash_attention(q_rot, k_rot, qkv, *, batch, seq, n_heads, n_kv_heads,
                    head_dim, tq=512, tk=256, out_dtype=jnp.bfloat16,
                    mxu_dtype=jnp.bfloat16):
    """Causal flash attention with GQA group blocking.

    q_rot: (B, nH, S, D)  rope'd, pre-scaled by 1/sqrt(D)
    k_rot: (B, nKV, S, D) rope'd
    qkv  : (B*S, (nH + 2*nKV)*D)  fused projection buffer; V read in place.
    Returns head-major (nH, B*S, D).
    """
    B, S, D = batch, seq, head_dim
    nH, nKV = n_heads, n_kv_heads
    G = nH // nKV
    tq, tk = _pick_tile(S, tq), _pick_tile(S, tk)
    qb, kb = S // tq, S // tk
    v_col0 = nH + nKV

    def _kmax(qi):
        return (qi * tq + tq - 1) // tk

    def k_index(b, h, qi, ki):
        # Clamp above-diagonal blocks to the last useful one: Pallas sees the
        # same block index and skips the redundant DMA.
        return (b, h, jnp.minimum(ki, _kmax(qi)), 0)

    def v_index(b, h, qi, ki):
        return (b * kb + jnp.minimum(ki, _kmax(qi)), v_col0 + h)

    kern = functools.partial(_flash_kernel, groups=G, tq=tq, tk=tk,
                             mxu_dtype=mxu_dtype)
    return pl.pallas_call(
        kern,
        out_shape=jax.ShapeDtypeStruct((nH, B * S, D), out_dtype),
        grid=(B, nKV, qb, kb),
        in_specs=[
            # One q block carries the whole GQA group -> K/V streamed once per
            # group instead of once per q head.
            pl.BlockSpec((1, G, tq, D), lambda b, h, qi, ki: (b, h, qi, 0)),
            pl.BlockSpec((1, 1, tk, D), k_index),
            pl.BlockSpec((tk, D), v_index),
        ],
        out_specs=pl.BlockSpec((G, tq, D),
                               lambda b, h, qi, ki: (h, b * qb + qi, 0)),
        scratch_shapes=[
            pltpu.VMEM((G, tq, 1), jnp.float32),   # running max m
            pltpu.VMEM((G, tq, 1), jnp.float32),   # running denom l
            pltpu.VMEM((G, tq, D), jnp.float32),   # running accumulator
        ],
        compiler_params=pltpu.CompilerParams(
            dimension_semantics=("parallel", "parallel", "parallel",
                                 "arbitrary"),
            vmem_limit_bytes=_vmem_limit_bytes(),
        ),
    )(q_rot, k_rot, qkv)


# ------------------------------ module wrapper -------------------------------

class QuantLlamaAttentionPallas:
    """QuantLlamaAttention forward (quantization disabled => plain Linear),
    causal prefill path, no KV cache."""

    def __init__(self, hidden_size, num_heads, num_kv_heads, *,
                 max_position=2048, rope_base=10000.0,
                 key=jax.random.PRNGKey(0), mxu_dtype=jnp.bfloat16):
        assert hidden_size % num_heads == 0
        assert num_heads % num_kv_heads == 0
        self.hidden_size = hidden_size
        self.num_heads = num_heads
        self.head_dim = hidden_size // num_heads
        assert self.head_dim % 128 == 0, "head_dim must be lane-aligned (128)"
        self.num_kv_heads = num_kv_heads
        self.num_kv_groups = num_heads // num_kv_heads
        self.mxu_dtype = mxu_dtype
        self.max_position = max_position

        kq, kk, kv_, ko = jax.random.split(key, 4)
        kv_dim = num_kv_heads * self.head_dim
        self.kv_dim = kv_dim
        w_q = 0.02 * jax.random.normal(kq, (hidden_size, hidden_size))
        w_k = 0.02 * jax.random.normal(kk, (hidden_size, kv_dim))
        w_v = 0.02 * jax.random.normal(kv_, (hidden_size, kv_dim))
        w_o = 0.02 * jax.random.normal(ko, (hidden_size, hidden_size))
        # Weights stored (in, out), pre-cast to the MXU dtype; q|k|v fused so x
        # streams over HBM once.
        self.w_qkv = jnp.concatenate([w_q, w_k, w_v], axis=1).astype(mxu_dtype)
        self.w_o = w_o.astype(mxu_dtype)

        # RoPE tables cached device-resident at init (no per-call host work).
        D = self.head_dim
        half = D // 2
        inv_freq = 1.0 / (rope_base **
                          (np.arange(0, D, 2, dtype=np.float64) / D))
        t = np.arange(max_position, dtype=np.float64)
        freqs = np.outer(t, inv_freq)                       # (P, D/2)
        emb = np.concatenate([freqs, freqs], axis=-1)       # (P, D)
        cos, sin = np.cos(emb), np.sin(emb)
        # signed sin so rotate_half collapses to roll * ssin inside the kernel
        ssin = np.concatenate([-sin[:, :half], sin[:, half:]], axis=-1)
        self.cos = jnp.asarray(cos, jnp.float32)
        self.sin = jnp.asarray(sin, jnp.float32)
        self.ssin = jnp.asarray(ssin, jnp.float32)

    def __call__(self, hidden_states, attention_mask=None):
        # TODO(synk): arbitrary additive attention_mask / padding and the
        # past_key_value / use_cache decode path are not implemented; the
        # standard causal prefill mask is generated in-kernel instead.
        assert attention_mask is None, "causal mask is generated in-kernel"
        B, S, H = hidden_states.shape
        assert H == self.hidden_size
        assert S % 8 == 0 and S <= self.max_position
        nH, nKV, D = self.num_heads, self.num_kv_heads, self.head_dim
        bf = self.mxu_dtype

        # Fused q/k/v projection; every intermediate stays bf16.
        x2d = hidden_states.reshape(B * S, H).astype(bf)
        qkv = matmul(x2d, self.w_qkv, out_dtype=bf, mxu_dtype=bf)

        cos, ssin = self.cos[:S], self.ssin[:S]
        # RoPE reads q/k tiles straight from the flat qkv buffer; 1/sqrt(D) is
        # folded into q so the score tile is never rescaled per kv step.
        q_rot = rope_from_qkv(qkv, cos, ssin, batch=B, seq=S, n_heads=nH,
                              head_dim=D, col_head_offset=0,
                              scale=1.0 / math.sqrt(D), out_dtype=bf)
        k_rot = rope_from_qkv(qkv, cos, ssin, batch=B, seq=S, n_heads=nKV,
                              head_dim=D, col_head_offset=nH, scale=1.0,
                              out_dtype=bf)

        # Causal flash attention; V read in place from qkv; head-major output.
        attn = flash_attention(q_rot, k_rot, qkv, batch=B, seq=S, n_heads=nH,
                               n_kv_heads=nKV, head_dim=D, out_dtype=bf,
                               mxu_dtype=bf)                 # (nH, B*S, D)

        out = o_projection(attn, self.w_o, out_dtype=jnp.float32, mxu_dtype=bf)
        return out.reshape(B, S, H)


# ---------------------------- pure-JAX reference -----------------------------

def _reference(mod, x):
    """Same math with matching bf16 MXU casts (apples-to-apples check)."""
    B, S, H = x.shape
    nH, nKV, D = mod.num_heads, mod.num_kv_heads, mod.head_dim
    G = mod.num_kv_groups
    bf = mod.mxu_dtype

    x2d = x.reshape(B * S, H).astype(bf)
    qkv = jnp.dot(x2d, mod.w_qkv, preferred_element_type=jnp.float32).astype(bf)
    q = qkv[:, :nH * D].reshape(B, S, nH, D).transpose(0, 2, 1, 3)
    k = qkv[:, nH * D:(nH + nKV) * D].reshape(B, S, nKV, D).transpose(0, 2, 1, 3)
    v = qkv[:, (nH + nKV) * D:].reshape(B, S, nKV, D).transpose(0, 2, 1, 3)

    cos, sin = mod.cos[:S], mod.sin[:S]

    def rope(t, scale):
        t = t.astype(jnp.float32)
        rot = jnp.concatenate([-t[..., D // 2:], t[..., :D // 2]], axis=-1)
        return ((t * cos + rot * sin) * scale).astype(bf)

    q = rope(q, 1.0 / math.sqrt(D))
    k = rope(k, 1.0)
    k = jnp.repeat(k, G, axis=1)
    v = jnp.repeat(v, G, axis=1)

    scores = jnp.einsum("bhqd,bhkd->bhqk", q, k,
                        preferred_element_type=jnp.float32)
    causal = np.tril(np.ones((S, S), dtype=bool))
    scores = jnp.where(causal[None, None], scores, -jnp.inf)
    p = jax.nn.softmax(scores, axis=-1).astype(bf)
    o = jnp.einsum("bhqk,bhkd->bhqd", p, v.astype(bf),
                   preferred_element_type=jnp.float32).astype(bf)
    o2d = o.transpose(0, 2, 1, 3).reshape(B * S, H)
    out = jnp.dot(o2d, mod.w_o, preferred_element_type=jnp.float32)
    return out.reshape(B, S, H)


# ----------------------------------- main ------------------------------------

if __name__ == "__main__":
    # Small, fast shapes; head_dim is kept at 128 (one TPU lane tile) so the
    # flat-buffer BlockSpecs stay (8,128)-aligned.
    B, S = 2, 16
    HIDDEN, NUM_HEADS, NUM_KV_HEADS = 512, 4, 2          # head_dim = 128, GQA=2

    key = jax.random.PRNGKey(0)
    k_x, k_w = jax.random.split(key)
    hidden_states = jax.random.normal(k_x, (B, S, HIDDEN), dtype=jnp.float32)

    module = QuantLlamaAttentionPallas(HIDDEN, NUM_HEADS, NUM_KV_HEADS,
                                       max_position=64, key=k_w)

    out = jax.block_until_ready(module(hidden_states))
    ref = jax.block_until_ready(_reference(module, hidden_states))

    assert out.shape == (B, S, HIDDEN)
    np.testing.assert_allclose(np.asarray(out), np.asarray(ref),
                               atol=2e-2, rtol=2e-2)

    print("KERNEL_OK")
</pallas_src>

<mosaic_0001>
module attributes {stable_mosaic.version = 11 : i64} {
  func.func @_matmul_kernel(%arg0: i32, %arg1: i32, %arg2: i32, %arg3: memref<32x512xbf16, #tpu.memory_space<vmem>>, %arg4: memref<512x512xbf16, #tpu.memory_space<vmem>>, %arg5: memref<32x512xbf16, #tpu.memory_space<vmem>>, %arg6: memref<32x512xf32, #tpu.memory_space<vmem>>) attributes {dimension_semantics = [#tpu.dimension_semantics<parallel>, #tpu.dimension_semantics<parallel>, #tpu.dimension_semantics<arbitrary>], iteration_bounds = array<i64: 1, 2, 1>, scalar_prefetch = 0 : i64, scratch_operands = 1 : i64, tpu.core_type = #tpu.core_type<tc>, window_params = [{transform_indices = @transform_0, window_bounds = array<i64: 32, 512>}, {transform_indices = @transform_1, window_bounds = array<i64: 512, 512>}, {transform_indices = @transform_2, window_bounds = array<i64: 32, 512>}]} {
    %c0_i32 = arith.constant 0 : i32
    %0 = arith.cmpi eq, %arg2, %c0_i32 : i32
    %1 = arith.extui %0 : i1 to i32
    %c0_i32_0 = arith.constant 0 : i32
    %2 = arith.cmpi ne, %1, %c0_i32_0 : i32
    scf.if %2 {
      %cst_10 = arith.constant 0.000000e+00 : f32
      %12 = vector.broadcast %cst_10 : f32 to vector<32x512xf32>
      %c0_11 = arith.constant 0 : index
      %c0_12 = arith.constant 0 : index
      %13 = vector.load %arg6[%c0_11, %c0_12] : memref<32x512xf32, #tpu.memory_space<vmem>>, vector<32x512xf32>
      tpu.vector_store %arg6[%c0_11, %c0_12], %12 {strides = array<i32>} : memref<32x512xf32, #tpu.memory_space<vmem>>, vector<32x512xf32>,
    } else {
    }
    %c0 = arith.constant 0 : index
    %c0_1 = arith.constant 0 : index
    %3 = vector.load %arg6[%c0, %c0_1] : memref<32x512xf32, #tpu.memory_space<vmem>>, vector<32x512xf32>
    %c0_2 = arith.constant 0 : index
    %c0_3 = arith.constant 0 : index
    %4 = vector.load %arg3[%c0_2, %c0_3] : memref<32x512xbf16, #tpu.memory_space<vmem>>, vector<32x512xbf16>
    %c0_4 = arith.constant 0 : index
    %c0_5 = arith.constant 0 : index
    %5 = vector.load %arg4[%c0_4, %c0_5] : memref<512x512xbf16, #tpu.memory_space<vmem>>, vector<512x512xbf16>
    %cst = arith.constant dense<0.000000e+00> : vector<32x512xf32>
    %6 = tpu.matmul %4, %5, %cst {dimension_numbers = #tpu.dot_dimension_numbers<[1], [0], [0], [1], [0, 0, 1, 1], [], []>} : vector<32x512xbf16>, vector<512x512xbf16>, vector<32x512xf32> -> vector<32x512xf32>
    %7 = arith.addf %3, %6 : vector<32x512xf32>
    %c0_6 = arith.constant 0 : index
    %c0_7 = arith.constant 0 : index
    %8 = vector.load %arg6[%c0_6, %c0_7] : memref<32x512xf32, #tpu.memory_space<vmem>>, vector<32x512xf32>
    tpu.vector_store %arg6[%c0_6, %c0_7], %7 {strides = array<i32>} : memref<32x512xf32, #tpu.memory_space<vmem>>, vector<32x512xf32>,
    %c0_i32_8 = arith.constant 0 : i32
    %9 = arith.cmpi eq, %arg2, %c0_i32_8 : i32
    %10 = arith.extui %9 : i1 to i32
    %c0_i32_9 = arith.constant 0 : i32
    %11 = arith.cmpi ne, %10, %c0_i32_9 : i32
    scf.if %11 {
      %c0_10 = arith.constant 0 : index
      %c0_11 = arith.constant 0 : index
      %12 = vector.load %arg6[%c0_10, %c0_11] : memref<32x512xf32, #tpu.memory_space<vmem>>, vector<32x512xf32>
      %13 = arith.truncf %12 : vector<32x512xf32> to vector<32x512xbf16>
      %c0_12 = arith.constant 0 : index
      %c0_13 = arith.constant 0 : index
      %14 = vector.load %arg5[%c0_12, %c0_13] : memref<32x512xbf16, #tpu.memory_space<vmem>>, vector<32x512xbf16>
      tpu.vector_store %arg5[%c0_12, %c0_13], %13 {strides = array<i32>} : memref<32x512xbf16, #tpu.memory_space<vmem>>, vector<32x512xbf16>,
    } else {
    }
    return
  }
  func.func @transform_0(%arg0: i32, %arg1: i32, %arg2: i32) -> (i32, i32) {
    %c0_i32 = arith.constant 0 : i32
    return %arg0, %arg2 : i32, i32
  }
  func.func @transform_1(%arg0: i32, %arg1: i32, %arg2: i32) -> (i32, i32) {
    %c0_i32 = arith.constant 0 : i32
    return %arg2, %arg1 : i32, i32
  }
  func.func @transform_2(%arg0: i32, %arg1: i32, %arg2: i32) -> (i32, i32) {
    %c0_i32 = arith.constant 0 : i32
    return %arg0, %arg1 : i32, i32
  }
}

</mosaic_0001>

<llo_original>
// kernel: tpu_custom_call.1
$region0: #{tpu_custom_call.1}
  #allocation0 [shape = 'u32[]', space=smem, size = 0x4, offset = 0x4, fixed_abs, tag = 'smem constant byte address 0x4 - core index']
  #allocation1 [shape = 'u32[144,128]{1,0:T(1,128)}', space=vmem, size = 0x12000, scoped, tag = 'internal scratch']
  #allocation2 [shape = 'f32[32,512]{1,0:T(8,128)}', space=vmem, size = 0x10000, scoped, tag = 'scratch operand']
  %s0 = inlined_call_operand.hbm [shape: bf16[32,512], index: 0, kind: input, shape index: {}]
  %s1 = inlined_call_operand.hbm [shape: bf16[512,1024], index: 1, kind: input, shape index: {}]
  %s2 = inlined_call_operand.hbm [shape: bf16[32,1024], index: 2, kind: output, shape index: {}]
  %s3 = sld [smem:[#allocation0]]
  $region57: #{tpu_custom_call.1} parent=0
    _
  %s5 = ssub.s32 1, %s3
  %s6 = scalar_select 0, %s5, %s3
  $region1: #{tpu_custom_call.1} parent=0
    #allocation3 [shape = 'u8[32768]{0}', space=vmem, size = 0x8000, scoped, tag = 'input window, operand 0, single buffered']
    #allocation4 [shape = 's32[2]{0}', space=sflag, size = 0x8, scoped, tag = 'scoped memory for tpu_custom_call.1']
    #allocation5 [shape = 's32[2]{0}', space=sflag, size = 0x8, scoped, tag = 'scoped memory for tpu_custom_call.1']
    #allocation6 [shape = 'u8[1048576]{0}', space=vmem, size = 0x100000, scoped, tag = 'input window, operand 1']
    #allocation7 [shape = 's32[2]{0}', space=sflag, size = 0x8, scoped, tag = 'scoped memory for tpu_custom_call.1']
    #allocation8 [shape = 'u8[65536]{0}', space=vmem, size = 0x10000, scoped, tag = 'output window, operand 0']
    %7 = vsyncpa [#allocation4], 0
    %8 = vsyncpa [#allocation7], 0
    %s9 = scalar_lea.sflag [#allocation7], 1
    %10 = vsyncpa %s9, 0
    %11 = vsyncpa [#allocation5], 0
    %s12 = scalar_lea.sflag [#allocation5], 1
    %13 = vsyncpa %s12, 0
    loop: start=0, step=1, limit=4
    $region2: #{tpu_custom_call.1} parent=1 // loop_pre_header
      _
    $region3: #{tpu_custom_call.1} parent=1 // loop_header
      %s15 = sphi 0, %s19
      %p16 = scmp.ge.s32.totalorder %s15, 4
      %s22 = sphi 0, %s41
      %s23 = sphi 0, %s37
      %s24 = sphi 0, %s33
      %s25 = sphi 0, %s22
      %s26 = sphi 0, %s23
      %s27 = sphi 0, %s24
      %s28 = sphi 0, %s25
      %s29 = sphi 0, %s26
      %s30 = sphi 0, %s27
      %s46 = sphi 0, %s48
      %s49 = sphi 0, %s46
      %s50 = sphi 0, %s49
      %s66 = sphi 0, %s50
      %s74 = sphi 0, %s76
      %s77 = sphi 0, %s74
      %s78 = sphi 0, %s77
      %s94 = sphi 0, %s78
      %s102 = sphi 0, %s104
      %s105 = sphi 0, %s102
      %s106 = sphi 0, %s105
      %s122 = sphi 0, %s106
    $region4: #{tpu_custom_call.1} parent=1 // loop_header_branch
      %18 = sbr.rel (%p16) target = $region8
    $region5: #{tpu_custom_call.1} parent=1 // loop_body
      %s20 = ssub.s32 %s15, 1
      %s21 = ssub.s32 %s15, 2
      %s31 = sadd.s32 1, %s24
      %p32 = scmp.ge.s32.totalorder %s31, 1
      %s33 = scalar_select %p32, 0, %s31
      %s34 = sadd.s32 1, %s23
      %s35 = scalar_select %p32, %s34, %s23
      %p36 = scmp.ge.s32.totalorder %s35, 2
      %s37 = scalar_select %p36, 0, %s35
      %s38 = sadd.s32 1, %s22
      %s39 = scalar_select %p36, %s38, %s22
      %p40 = scmp.ge.s32.totalorder %s39, 1
      %s41 = scalar_select %p40, 0, %s39
      %s42 = ssub.s32 %s22, %s41
      %s43 = ssub.s32 %s24, %s33
      %s44 = sor.u32 %s42, %s43
      %p45 = scmp.eq.s32.totalorder %s44, 0
      %s47 = sadd.s32 %s46, 1
      %s48 = scalar_select %p45, %s46, %s47
      %p51 = pneg %p45
      %p52 = scmp.eq.s32.totalorder %s15, 1
      %p53 = por %p51, %p52
      %p54 = scmp.ne.s32.totalorder %s46, %s49
      %p55 = scmp.eq.s32.totalorder %s15, 0
      %p56 = por %p54, %p55
      %p57 = scmp.ne.s32.totalorder %s46, %s49
      %p58 = scmp.eq.s32.totalorder %s20, 1
      %p59 = por %p57, %p58
      %p60 = scmp.ne.s32.totalorder %s49, %s50
      %p61 = scmp.eq.s32.totalorder %s20, 0
      %p62 = por %p60, %p61
      %p63 = scmp.ne.s32.totalorder %s49, %s50
      %p64 = scmp.eq.s32.totalorder %s21, 1
      %p65 = por %p63, %p64
      %p67 = scmp.ne.s32.totalorder %s50, %s66
      %p68 = scmp.eq.s32.totalorder %s21, 0
      %p69 = por %p67, %p68
      %s70 = ssub.s32 %s24, %s33
      %s71 = ssub.s32 %s23, %s37
      %s72 = sor.u32 %s70, %s71
      %p73 = scmp.eq.s32.totalorder %s72, 0
      %s75 = sadd.s32 %s74, 1
      %s76 = scalar_select %p73, %s74, %s75
      %p79 = pneg %p73
      %p80 = scmp.eq.s32.totalorder %s15, 1
      %p81 = por %p79, %p80
      %p82 = scmp.ne.s32.totalorder %s74, %s77
      %p83 = scmp.eq.s32.totalorder %s15, 0
      %p84 = por %p82, %p83
      %p85 = scmp.ne.s32.totalorder %s74, %s77
      %p86 = scmp.eq.s32.totalorder %s20, 1
      %p87 = por %p85, %p86
      %p88 = scmp.ne.s32.totalorder %s77, %s78
      %p89 = scmp.eq.s32.totalorder %s20, 0
      %p90 = por %p88, %p89
      %p91 = scmp.ne.s32.totalorder %s77, %s78
      %p92 = scmp.eq.s32.totalorder %s21, 1
      %p93 = por %p91, %p92
      %p95 = scmp.ne.s32.totalorder %s78, %s94
      %p96 = scmp.eq.s32.totalorder %s21, 0
      %p97 = por %p95, %p96
      %s98 = ssub.s32 %s22, %s41
      %s99 = ssub.s32 %s23, %s37
      %s100 = sor.u32 %s98, %s99
      %p101 = scmp.eq.s32.totalorder %s100, 0
      %s103 = sadd.s32 %s102, 1
      %s104 = scalar_select %p101, %s102, %s103
      %p107 = pneg %p101
      %p108 = scmp.eq.s32.totalorder %s15, 1
      %p109 = por %p107, %p108
      %p110 = scmp.ne.s32.totalorder %s102, %s105
      %p111 = scmp.eq.s32.totalorder %s15, 0
      %p112 = por %p110, %p111
      %p113 = scmp.ne.s32.totalorder %s102, %s105
      %p114 = scmp.eq.s32.totalorder %s20, 1
      %p115 = por %p113, %p114
      %p116 = scmp.ne.s32.totalorder %s105, %s106
      %p117 = scmp.eq.s32.totalorder %s20, 0
      %p118 = por %p116, %p117
      %p119 = scmp.ne.s32.totalorder %s105, %s106
      %p120 = scmp.eq.s32.totalorder %s21, 1
      %p121 = por %p119, %p120
      %p123 = scmp.ne.s32.totalorder %s106, %s122
      %p124 = scmp.eq.s32.totalorder %s21, 0
      %p125 = por %p123, %p124
      %p126 = scmp.le.s32.totalorder 1, %s15
      %p127 = scmp.lt.s32.totalorder %s15, 3
      %p128 = pnand %p126, %p127
      %p129 = pneg %p128
      // Predicated region
      $region9: #{tpu_custom_call.1} parent=5 // pred_check
        _
      $region10: #{tpu_custom_call.1} parent=5 // pred_check_branch
        %131 = sbr.rel (%p128) target = $region12
      $region11: #{tpu_custom_call.1} parent=5 // pred_region
        %s132 = ssub.s32 %s15, 1
        // Predicated region
        $region13: #{tpu_custom_call.1} parent=11 // pred_check
          %p133 = pneg %p62
        $region14: #{tpu_custom_call.1} parent=11 // pred_check_branch
          %135 = sbr.rel (%p133) target = $region16
        $region15: #{tpu_custom_call.1} parent=11 // pred_region
          %s136 = smul.u32 4, %s25
          %s137 = smul.u32 4, %s27
          %s139 = ssub.s32 1024, 1024
          %140 = vsyncadd [#allocation4], %s139
          %s141 = smul.addr %s136, 4
          %s142 = sadd.s32 %s137, %s141
          %s143 = smul.addr %s142, 64
          %s144 = scalar_lea.hbm %s0, %s143
          %s145 = sshll.u32 [#allocation3], 4
          %s146 = int_to_ptr.vmem [resolvable:$true] %s145
          %151 = dma.hbm_to_vmem [thread:$0]  %s144, 1024, %s146, [#allocation4], 256, 256, 16
        $region16: #{tpu_custom_call.1} parent=11 // pred_fallthru
          _
      $region12: #{tpu_custom_call.1} parent=5 // pred_fallthru
        _
      %p152 = scmp.lt.s32.totalorder %s15, 2
      // Predicated region
      $region17: #{tpu_custom_call.1} parent=5 // pred_check
        %p153 = pneg %p152
      $region18: #{tpu_custom_call.1} parent=5 // pred_check_branch
        %155 = sbr.rel (%p153) target = $region20
      $region19: #{tpu_custom_call.1} parent=5 // pred_region
        // Predicated region
        $region21: #{tpu_custom_call.1} parent=19 // pred_check
          %p156 = pneg %p84
        $region22: #{tpu_custom_call.1} parent=19 // pred_check_branch
          %158 = sbr.rel (%p156) target = $region24
        $region23: #{tpu_custom_call.1} parent=19 // pred_region
          %s159 = sand.u32 %s74, 1
          %s160 = scalar_lea.sflag [#allocation7], %s159
          %s161 = sand.u32 %s74, 1
          %s162 = smul.addr %s161, 1024
          %s163 = scalar_lea.vmem [#allocation6], %s162
          %s164 = smul.u32 64, %s24
          %s165 = smul.u32 4, %s23
          %s167 = ssub.s32 16384, 16384
          %168 = vsyncadd %s160, %s167
          %s169 = smul.addr %s164, 8
          %s170 = sadd.s32 %s165, %s169
          %s171 = smul.addr %s170, 64
          %s172 = scalar_lea.hbm %s1, %s171
          %s173 = sshll.u32 %s163, 4
          %s174 = int_to_ptr.vmem [resolvable:$true] %s173
          %179 = dma.hbm_to_vmem [thread:$0]  %s172, 16384, %s174, %s160, 512, 256, 16
        $region24: #{tpu_custom_call.1} parent=19 // pred_fallthru
          _
      $region20: #{tpu_custom_call.1} parent=5 // pred_fallthru
        _
      %p180 = scmp.le.s32.totalorder 1, %s15
      %p181 = scmp.lt.s32.totalorder %s15, 3
      %p182 = pnand %p180, %p181
      %p183 = pneg %p182
      // Predicated region
      $region25: #{tpu_custom_call.1} parent=5 // pred_check
        _
      $region26: #{tpu_custom_call.1} parent=5 // pred_check_branch
        %185 = sbr.rel (%p182) target = $region28
      $region27: #{tpu_custom_call.1} parent=5 // pred_region
        %s186 = ssub.s32 %s15, 1
        // Predicated region
        $region29: #{tpu_custom_call.1} parent=27 // pred_check
          %p187 = pneg %p62
        $region30: #{tpu_custom_call.1} parent=27 // pred_check_branch
          %189 = sbr.rel (%p187) target = $region32
        $region31: #{tpu_custom_call.1} parent=27 // pred_region
          %190 = dma.done [#allocation4], 1024
        $region32: #{tpu_custom_call.1} parent=27 // pred_fallthru
          _
        %s191 = sand.u32 %s77, 1
        %s192 = scalar_lea.sflag [#allocation7], %s191
        %s193 = sand.u32 %s77, 1
        %s194 = smul.addr %s193, 1024
        %s195 = scalar_lea.vmem [#allocation6], %s194
        // Predicated region
        $region33: #{tpu_custom_call.1} parent=27 // pred_check
          %p196 = pneg %p90
        $region34: #{tpu_custom_call.1} parent=27 // pred_check_branch
          %198 = sbr.rel (%p196) target = $region36
        $region35: #{tpu_custom_call.1} parent=27 // pred_region
          %199 = dma.done %s192, 16384
        $region36: #{tpu_custom_call.1} parent=27 // pred_fallthru
          _
        %p200 = pneg %p62
        %p201 = pneg %p59
        %s202 = sand.u32 %s77, 1
        %s203 = scalar_lea.sflag [#allocation7], %s202
        %s204 = sand.u32 %s77, 1
        %s205 = smul.addr %s204, 1024
        %s206 = scalar_lea.vmem [#allocation6], %s205
        %p207 = pneg %p90
        %p208 = pneg %p87
        %p209 = pneg %p118
        %p210 = pneg %p115
        %s211 = sand.u32 %s105, 1
        %s212 = scalar_lea.sflag [#allocation5], %s211
        %s213 = sand.u32 %s105, 1
        %s214 = smul.addr %s213, 64
        %s215 = scalar_lea.vmem [#allocation8], %s214
        %s216 = smul.u32 4, %s25
        %s217 = smul.u32 4, %s27
        %s218 = smul.u32 64, %s27
        %s219 = smul.u32 4, %s26
        %s220 = smul.u32 4, %s25
        %s221 = smul.u32 4, %s26
        %p222 = scmp.eq.s32.totalorder %s27, 0
        // Predicated region
        $region37: #{tpu_custom_call.1} parent=27 // pred_check
          %p223 = pneg %p222
        $region38: #{tpu_custom_call.1} parent=27 // pred_check_branch
          %225 = sbr.rel (%p223) target = $region40
        $region39: #{tpu_custom_call.1} parent=27 // pred_region
          %226 = vst [vmem:[#allocation2] sm:$0xff] 0.0
          %227 = vst [vmem:[#allocation2 + $0x8] sm:$0xff] 0.0
          %228 = vst [vmem:[#allocation2 + $0x10] sm:$0xff] 0.0
          %229 = vst [vmem:[#allocation2 + $0x18] sm:$0xff] 0.0
          %230 = vst [vmem:[#allocation2 + $0x20] sm:$0xff] 0.0
          %231 = vst [vmem:[#allocation2 + $0x28] sm:$0xff] 0.0
          %232 = vst [vmem:[#allocation2 + $0x30] sm:$0xff] 0.0
          %233 = vst [vmem:[#allocation2 + $0x38] sm:$0xff] 0.0
          %234 = vst [vmem:[#allocation2 + $0x40] sm:$0xff] 0.0
          %235 = vst [vmem:[#allocation2 + $0x48] sm:$0xff] 0.0
          %236 = vst [vmem:[#allocation2 + $0x50] sm:$0xff] 0.0
          %237 = vst [vmem:[#allocation2 + $0x58] sm:$0xff] 0.0
          %238 = vst [vmem:[#allocation2 + $0x60] sm:$0xff] 0.0
          %239 = vst [vmem:[#allocation2 + $0x68] sm:$0xff] 0.0
          %240 = vst [vmem:[#allocation2 + $0x70] sm:$0xff] 0.0
          %241 = vst [vmem:[#allocation2 + $0x78] sm:$0xff] 0.0
        $region40: #{tpu_custom_call.1} parent=27 // pred_fallthru
          _
        %v242 = vld [vmem:[#allocation2] sm:$0xff]
        %v243 = vld [vmem:[#allocation2 + $0x8] sm:$0xff]
        %v244 = vld [vmem:[#allocation2 + $0x10] sm:$0xff]
        %v245 = vld [vmem:[#allocation2 + $0x18] sm:$0xff]
        %v246 = vld [vmem:[#allocation2 + $0x20] sm:$0xff]
        %v247 = vld [vmem:[#allocation2 + $0x28] sm:$0xff]
        %v248 = vld [vmem:[#allocation2 + $0x30] sm:$0xff]
        %v249 = vld [vmem:[#allocation2 + $0x38] sm:$0xff]
        %v250 = vld [vmem:[#allocation2 + $0x40] sm:$0xff]
        %v251 = vld [vmem:[#allocation2 + $0x48] sm:$0xff]
        %v252 = vld [vmem:[#allocation2 + $0x50] sm:$0xff]
        %v253 = vld [vmem:[#allocation2 + $0x58] sm:$0xff]
        %v254 = vld [vmem:[#allocation2 + $0x60] sm:$0xff]
        %v255 = vld [vmem:[#allocation2 + $0x68] sm:$0xff]
        %v256 = vld [vmem:[#allocation2 + $0x70] sm:$0xff]
        %v257 = vld [vmem:[#allocation2 + $0x78] sm:$0xff]
        %v258 = vld [vmem:[#allocation3] sm:$0xff]
        %v259 = vld [vmem:[#allocation3 + $0x8] sm:$0xff]
        %v260 = vld [vmem:[#allocation3 + $0x10] sm:$0xff]
        %v261 = vld [vmem:[#allocation3 + $0x18] sm:$0xff]
        %v262 = vld [vmem:[#allocation3 + $0x20] sm:$0xff]
        %v263 = vld [vmem:[#allocation3 + $0x28] sm:$0xff]
        %v264 = vld [vmem:[#allocation3 + $0x30] sm:$0xff]
        %v265 = vld [vmem:[#allocation3 + $0x38] sm:$0xff]
        %v266 = vld [vmem:[%s195] sm:$0xff]
        %v267 = vld [vmem:[%s195 + $0x8] sm:$0xff]
        %v268 = vld [vmem:[%s195 + $0x10] sm:$0xff]
        %v269 = vld [vmem:[%s195 + $0x18] sm:$0xff]
        %v270 = vld [vmem:[%s195 + $0x20] sm:$0xff]
        %v271 = vld [vmem:[%s195 + $0x28] sm:$0xff]
        %v272 = vld [vmem:[%s195 + $0x30] sm:$0xff]
        %v273 = vld [vmem:[%s195 + $0x38] sm:$0xff]
        %v274 = vld [vmem:[%s195 + $0x40] sm:$0xff]
        %v275 = vld [vmem:[%s195 + $0x48] sm:$0xff]
        %v276 = vld [vmem:[%s195 + $0x50] sm:$0xff]
        %v277 = vld [vmem:[%s195 + $0x58] sm:$0xff]
        %v278 = vld [vmem:[%s195 + $0x60] sm:$0xff]
        %v279 = vld [vmem:[%s195 + $0x68] sm:$0xff]
        %v280 = vld [vmem:[%s195 + $0x70] sm:$0xff]
        %v281 = vld [vmem:[%s195 + $0x78] sm:$0xff]
        %v282 = vld [vmem:[%s195 + $0x80] sm:$0xff]
        %v283 = vld [vmem:[%s195 + $0x88] sm:$0xff]
        %v284 = vld [vmem:[%s195 + $0x90] sm:$0xff]
        %v285 = vld [vmem:[%s195 + $0x98] sm:$0xff]
        %v286 = vld [vmem:[%s195 + $0xa0] sm:$0xff]
        %v287 = vld [vmem:[%s195 + $0xa8] sm:$0xff]
        %v288 = vld [vmem:[%s195 + $0xb0] sm:$0xff]
        %v289 = vld [vmem:[%s195 + $0xb8] sm:$0xff]
        %v290 = vld [vmem:[%s195 + $0xc0] sm:$0xff]
        %v291 = vld [vmem:[%s195 + $0xc8] sm:$0xff]
        %v292 = vld [vmem:[%s195 + $0xd0] sm:$0xff]
        %v293 = vld [vmem:[%s195 + $0xd8] sm:$0xff]
        %v294 = vld [vmem:[%s195 + $0xe0] sm:$0xff]
        %v295 = vld [vmem:[%s195 + $0xe8] sm:$0xff]
        %v296 = vld [vmem:[%s195 + $0xf0] sm:$0xff]
        %v297 = vld [vmem:[%s195 + $0xf8] sm:$0xff]
        %v298 = vld [vmem:[%s195 + $0x100] sm:$0xff]
        %v299 = vld [vmem:[%s195 + $0x108] sm:$0xff]
        %v300 = vld [vmem:[%s195 + $0x110] sm:$0xff]
        %v301 = vld [vmem:[%s195 + $0x118] sm:$0xff]
        %v302 = vld [vmem:[%s195 + $0x120] sm:$0xff]
        %v303 = vld [vmem:[%s195 + $0x128] sm:$0xff]
        %v304 = vld [vmem:[%s195 + $0x130] sm:$0xff]
        %v305 = vld [vmem:[%s195 + $0x138] sm:$0xff]
        %v306 = vld [vmem:[%s195 + $0x140] sm:$0xff]
        %v307 = vld [vmem:[%s195 + $0x148] sm:$0xff]
        %v308 = vld [vmem:[%s195 + $0x150] sm:$0xff]
        %v309 = vld [vmem:[%s195 + $0x158] sm:$0xff]
        %v310 = vld [vmem:[%s195 + $0x160] sm:$0xff]
        %v311 = vld [vmem:[%s195 + $0x168] sm:$0xff]
        %v312 = vld [vmem:[%s195 + $0x170] sm:$0xff]
        %v313 = vld [vmem:[%s195 + $0x178] sm:$0xff]
        %v314 = vld [vmem:[%s195 + $0x180] sm:$0xff]
        %v315 = vld [vmem:[%s195 + $0x188] sm:$0xff]
        %v316 = vld [vmem:[%s195 + $0x190] sm:$0xff]
        %v317 = vld [vmem:[%s195 + $0x198] sm:$0xff]
        %v318 = vld [vmem:[%s195 + $0x1a0] sm:$0xff]
        %v319 = vld [vmem:[%s195 + $0x1a8] sm:$0xff]
        %v320 = vld [vmem:[%s195 + $0x1b0] sm:$0xff]
        %v321 = vld [vmem:[%s195 + $0x1b8] sm:$0xff]
        %v322 = vld [vmem:[%s195 + $0x1c0] sm:$0xff]
        %v323 = vld [vmem:[%s195 + $0x1c8] sm:$0xff]
        %v324 = vld [vmem:[%s195 + $0x1d0] sm:$0xff]
        %v325 = vld [vmem:[%s195 + $0x1d8] sm:$0xff]
        %v326 = vld [vmem:[%s195 + $0x1e0] sm:$0xff]
        %v327 = vld [vmem:[%s195 + $0x1e8] sm:$0xff]
        %v328 = vld [vmem:[%s195 + $0x1f0] sm:$0xff]
        %v329 = vld [vmem:[%s195 + $0x1f8] sm:$0xff]
        %v330 = vld [vmem:[%s195 + $0x200] sm:$0xff]
        %v331 = vld [vmem:[%s195 + $0x208] sm:$0xff]
        %v332 = vld [vmem:[%s195 + $0x210] sm:$0xff]
        %v333 = vld [vmem:[%s195 + $0x218] sm:$0xff]
        %v334 = vld [vmem:[%s195 + $0x220] sm:$0xff]
        %v335 = vld [vmem:[%s195 + $0x228] sm:$0xff]
        %v336 = vld [vmem:[%s195 + $0x230] sm:$0xff]
        %v337 = vld [vmem:[%s195 + $0x238] sm:$0xff]
        %v338 = vld [vmem:[%s195 + $0x240] sm:$0xff]
        %v339 = vld [vmem:[%s195 + $0x248] sm:$0xff]
        %v340 = vld [vmem:[%s195 + $0x250] sm:$0xff]
        %v341 = vld [vmem:[%s195 + $0x258] sm:$0xff]
        %v342 = vld [vmem:[%s195 + $0x260] sm:$0xff]
        %v343 = vld [vmem:[%s195 + $0x268] sm:$0xff]
        %v344 = vld [vmem:[%s195 + $0x270] sm:$0xff]
        %v345 = vld [vmem:[%s195 + $0x278] sm:$0xff]
        %v346 = vld [vmem:[%s195 + $0x280] sm:$0xff]
        %v347 = vld [vmem:[%s195 + $0x288] sm:$0xff]
        %v348 = vld [vmem:[%s195 + $0x290] sm:$0xff]
        %v349 = vld [vmem:[%s195 + $0x298] sm:$0xff]
        %v350 = vld [vmem:[%s195 + $0x2a0] sm:$0xff]
        %v351 = vld [vmem:[%s195 + $0x2a8] sm:$0xff]
        %v352 = vld [vmem:[%s195 + $0x2b0] sm:$0xff]
        %v353 = vld [vmem:[%s195 + $0x2b8] sm:$0xff]
        %v354 = vld [vmem:[%s195 + $0x2c0] sm:$0xff]
        %v355 = vld [vmem:[%s195 + $0x2c8] sm:$0xff]
        %v356 = vld [vmem:[%s195 + $0x2d0] sm:$0xff]
        %v357 = vld [vmem:[%s195 + $0x2d8] sm:$0xff]
        %v358 = vld [vmem:[%s195 + $0x2e0] sm:$0xff]
        %v359 = vld [vmem:[%s195 + $0x2e8] sm:$0xff]
        %v360 = vld [vmem:[%s195 + $0x2f0] sm:$0xff]
        %v361 = vld [vmem:[%s195 + $0x2f8] sm:$0xff]
        %v362 = vld [vmem:[%s195 + $0x300] sm:$0xff]
        %v363 = vld [vmem:[%s195 + $0x308] sm:$0xff]
        %v364 = vld [vmem:[%s195 + $0x310] sm:$0xff]
        %v365 = vld [vmem:[%s195 + $0x318] sm:$0xff]
        %v366 = vld [vmem:[%s195 + $0x320] sm:$0xff]
        %v367 = vld [vmem:[%s195 + $0x328] sm:$0xff]
        %v368 = vld [vmem:[%s195 + $0x330] sm:$0xff]
        %v369 = vld [vmem:[%s195 + $0x338] sm:$0xff]
        %v370 = vld [vmem:[%s195 + $0x340] sm:$0xff]
        %v371 = vld [vmem:[%s195 + $0x348] sm:$0xff]
        %v372 = vld [vmem:[%s195 + $0x350] sm:$0xff]
        %v373 = vld [vmem:[%s195 + $0x358] sm:$0xff]
        %v374 = vld [vmem:[%s195 + $0x360] sm:$0xff]
        %v375 = vld [vmem:[%s195 + $0x368] sm:$0xff]
        %v376 = vld [vmem:[%s195 + $0x370] sm:$0xff]
        %v377 = vld [vmem:[%s195 + $0x378] sm:$0xff]
        %v378 = vld [vmem:[%s195 + $0x380] sm:$0xff]
        %v379 = vld [vmem:[%s195 + $0x388] sm:$0xff]
        %v380 = vld [vmem:[%s195 + $0x390] sm:$0xff]
        %v381 = vld [vmem:[%s195 + $0x398] sm:$0xff]
        %v382 = vld [vmem:[%s195 + $0x3a0] sm:$0xff]
        %v383 = vld [vmem:[%s195 + $0x3a8] sm:$0xff]
        %v384 = vld [vmem:[%s195 + $0x3b0] sm:$0xff]
        %v385 = vld [vmem:[%s195 + $0x3b8] sm:$0xff]
        %v386 = vld [vmem:[%s195 + $0x3c0] sm:$0xff]
        %v387 = vld [vmem:[%s195 + $0x3c8] sm:$0xff]
        %v388 = vld [vmem:[%s195 + $0x3d0] sm:$0xff]
        %v389 = vld [vmem:[%s195 + $0x3d8] sm:$0xff]
        %v390 = vld [vmem:[%s195 + $0x3e0] sm:$0xff]
        %v391 = vld [vmem:[%s195 + $0x3e8] sm:$0xff]
        %v392 = vld [vmem:[%s195 + $0x3f0] sm:$0xff]
        %v393 = vld [vmem:[%s195 + $0x3f8] sm:$0xff]
        %v402 = vunpack.c.l.b16 %v258
        %v403 = vunpack.c.h.b16 %v258
        %v404 = vunpack.c.l.b16 %v259
        %v405 = vunpack.c.h.b16 %v259
        %v406 = vunpack.c.l.b16 %v260
        %v407 = vunpack.c.h.b16 %v260
        %v408 = vunpack.c.l.b16 %v261
        %v409 = vunpack.c.h.b16 %v261
        %v410 = vunpack.c.l.b16 %v262
        %v411 = vunpack.c.h.b16 %v262
        %v412 = vunpack.c.l.b16 %v263
        %v413 = vunpack.c.h.b16 %v263
        %v414 = vunpack.c.l.b16 %v264
        %v415 = vunpack.c.h.b16 %v264
        %v416 = vunpack.c.l.b16 %v265
        %v417 = vunpack.c.h.b16 %v265
        %v418 = vpack.c.b16 %v406, %v402
        %v419 = vpack.c.b16 %v407, %v403
        %v420 = vpack.c.b16 %v408, %v404
        %v421 = vpack.c.b16 %v409, %v405
        %v422 = vpack.c.b16 %v414, %v410
        %v423 = vpack.c.b16 %v415, %v411
        %v424 = vpack.c.b16 %v416, %v412
        %v425 = vpack.c.b16 %v417, %v413
        %v562 = vunpack.c.l.b16 %v266
        %v563 = vunpack.c.h.b16 %v266
        %v564 = vunpack.c.l.b16 %v267
        %v565 = vunpack.c.h.b16 %v267
        %v566 = vunpack.c.l.b16 %v268
        %v567 = vunpack.c.h.b16 %v268
        %v568 = vunpack.c.l.b16 %v269
        %v569 = vunpack.c.h.b16 %v269
        %v570 = vunpack.c.l.b16 %v270
        %v571 = vunpack.c.h.b16 %v270
        %v572 = vunpack.c.l.b16 %v271
        %v573 = vunpack.c.h.b16 %v271
        %v574 = vunpack.c.l.b16 %v272
        %v575 = vunpack.c.h.b16 %v272
        %v576 = vunpack.c.l.b16 %v273
        %v577 = vunpack.c.h.b16 %v273
        %v578 = vunpack.c.l.b16 %v274
        %v579 = vunpack.c.h.b16 %v274
        %v580 = vunpack.c.l.b16 %v275
        %v581 = vunpack.c.h.b16 %v275
        %v582 = vunpack.c.l.b16 %v276
        %v583 = vunpack.c.h.b16 %v276
        %v584 = vunpack.c.l.b16 %v277
        %v585 = vunpack.c.h.b16 %v277
        %v586 = vunpack.c.l.b16 %v278
        %v587 = vunpack.c.h.b16 %v278
        %v588 = vunpack.c.l.b16 %v279
        %v589 = vunpack.c.h.b16 %v279
        %v590 = vunpack.c.l.b16 %v280
        %v591 = vunpack.c.h.b16 %v280
        %v592 = vunpack.c.l.b16 %v281
        %v593 = vunpack.c.h.b16 %v281
        %v594 = vunpack.c.l.b16 %v282
        %v595 = vunpack.c.h.b16 %v282
        %v596 = vunpack.c.l.b16 %v283
        %v597 = vunpack.c.h.b16 %v283
        %v598 = vunpack.c.l.b16 %v284
        %v599 = vunpack.c.h.b16 %v284
        %v600 = vunpack.c.l.b16 %v285
        %v601 = vunpack.c.h.b16 %v285
        %v602 = vunpack.c.l.b16 %v286
        %v603 = vunpack.c.h.b16 %v286
        %v604 = vunpack.c.l.b16 %v287
        %v605 = vunpack.c.h.b16 %v287
        %v606 = vunpack.c.l.b16 %v288
        %v607 = vunpack.c.h.b16 %v288
        %v608 = vunpack.c.l.b16 %v289
        %v609 = vunpack.c.h.b16 %v289
        %v610 = vunpack.c.l.b16 %v290
        %v611 = vunpack.c.h.b16 %v290
        %v612 = vunpack.c.l.b16 %v291
        %v613 = vunpack.c.h.b16 %v291
        %v614 = vunpack.c.l.b16 %v292
        %v615 = vunpack.c.h.b16 %v292
        %v616 = vunpack.c.l.b16 %v293
        %v617 = vunpack.c.h.b16 %v293
        %v618 = vunpack.c.l.b16 %v294
        %v619 = vunpack.c.h.b16 %v294
        %v620 = vunpack.c.l.b16 %v295
        %v621 = vunpack.c.h.b16 %v295
        %v622 = vunpack.c.l.b16 %v296
        %v623 = vunpack.c.h.b16 %v296
        %v624 = vunpack.c.l.b16 %v297
        %v625 = vunpack.c.h.b16 %v297
        %v626 = vunpack.c.l.b16 %v298
        %v627 = vunpack.c.h.b16 %v298
        %v628 = vunpack.c.l.b16 %v299
        %v629 = vunpack.c.h.b16 %v299
        %v630 = vunpack.c.l.b16 %v300
        %v631 = vunpack.c.h.b16 %v300
        %v632 = vunpack.c.l.b16 %v301
        %v633 = vunpack.c.h.b16 %v301
        %v634 = vunpack.c.l.b16 %v302
        %v635 = vunpack.c.h.b16 %v302
        %v636 = vunpack.c.l.b16 %v303
        %v637 = vunpack.c.h.b16 %v303
        %v638 = vunpack.c.l.b16 %v304
        %v639 = vunpack.c.h.b16 %v304
        %v640 = vunpack.c.l.b16 %v305
        %v641 = vunpack.c.h.b16 %v305
        %v642 = vunpack.c.l.b16 %v306
        %v643 = vunpack.c.h.b16 %v306
        %v644 = vunpack.c.l.b16 %v307
        %v645 = vunpack.c.h.b16 %v307
        %v646 = vunpack.c.l.b16 %v308
        %v647 = vunpack.c.h.b16 %v308
        %v648 = vunpack.c.l.b16 %v309
        %v649 = vunpack.c.h.b16 %v309
        %v650 = vunpack.c.l.b16 %v310
        %v651 = vunpack.c.h.b16 %v310
        %v652 = vunpack.c.l.b16 %v311
        %v653 = vunpack.c.h.b16 %v311
        %v654 = vunpack.c.l.b16 %v312
        %v655 = vunpack.c.h.b16 %v312
        %v656 = vunpack.c.l.b16 %v313
        %v657 = vunpack.c.h.b16 %v313
        %v658 = vunpack.c.l.b16 %v314
        %v659 = vunpack.c.h.b16 %v314
        %v660 = vunpack.c.l.b16 %v315
        %v661 = vunpack.c.h.b16 %v315
        %v662 = vunpack.c.l.b16 %v316
        %v663 = vunpack.c.h.b16 %v316
        %v664 = vunpack.c.l.b16 %v317
        %v665 = vunpack.c.h.b16 %v317
        %v666 = vunpack.c.l.b16 %v318
        %v667 = vunpack.c.h.b16 %v318
        %v668 = vunpack.c.l.b16 %v319
        %v669 = vunpack.c.h.b16 %v319
        %v670 = vunpack.c.l.b16 %v320
        %v671 = vunpack.c.h.b16 %v320
        %v672 = vunpack.c.l.b16 %v321
        %v673 = vunpack.c.h.b16 %v321
        %v674 = vunpack.c.l.b16 %v322
        %v675 = vunpack.c.h.b16 %v322
        %v676 = vunpack.c.l.b16 %v323
        %v677 = vunpack.c.h.b16 %v323
        %v678 = vunpack.c.l.b16 %v324
        %v679 = vunpack.c.h.b16 %v324
        %v680 = vunpack.c.l.b16 %v325
        %v681 = vunpack.c.h.b16 %v325
        %v682 = vunpack.c.l.b16 %v326
        %v683 = vunpack.c.h.b16 %v326
        %v684 = vunpack.c.l.b16 %v327
        %v685 = vunpack.c.h.b16 %v327
        %v686 = vunpack.c.l.b16 %v328
        %v687 = vunpack.c.h.b16 %v328
        %v688 = vunpack.c.l.b16 %v329
        %v689 = vunpack.c.h.b16 %v329
        %v690 = vunpack.c.l.b16 %v330
        %v691 = vunpack.c.h.b16 %v330
        %v692 = vunpack.c.l.b16 %v331
        %v693 = vunpack.c.h.b16 %v331
        %v694 = vunpack.c.l.b16 %v332
        %v695 = vunpack.c.h.b16 %v332
        %v696 = vunpack.c.l.b16 %v333
        %v697 = vunpack.c.h.b16 %v333
        %v698 = vunpack.c.l.b16 %v334
        %v699 = vunpack.c.h.b16 %v334
        %v700 = vunpack.c.l.b16 %v335
        %v701 = vunpack.c.h.b16 %v335
        %v702 = vunpack.c.l.b16 %v336
        %v703 = vunpack.c.h.b16 %v336
        %v704 = vunpack.c.l.b16 %v337
        %v705 = vunpack.c.h.b16 %v337
        %v706 = vunpack.c.l.b16 %v338
        %v707 = vunpack.c.h.b16 %v338
        %v708 = vunpack.c.l.b16 %v339
        %v709 = vunpack.c.h.b16 %v339
        %v710 = vunpack.c.l.b16 %v340
        %v711 = vunpack.c.h.b16 %v340
        %v712 = vunpack.c.l.b16 %v341
        %v713 = vunpack.c.h.b16 %v341
        %v714 = vunpack.c.l.b16 %v342
        %v715 = vunpack.c.h.b16 %v342
        %v716 = vunpack.c.l.b16 %v343
        %v717 = vunpack.c.h.b16 %v343
        %v718 = vunpack.c.l.b16 %v344
        %v719 = vunpack.c.h.b16 %v344
        %v720 = vunpack.c.l.b16 %v345
        %v721 = vunpack.c.h.b16 %v345
        %v722 = vunpack.c.l.b16 %v346
        %v723 = vunpack.c.h.b16 %v346
        %v724 = vunpack.c.l.b16 %v347
        %v725 = vunpack.c.h.b16 %v347
        %v726 = vunpack.c.l.b16 %v348
        %v727 = vunpack.c.h.b16 %v348
        %v728 = vunpack.c.l.b16 %v349
        %v729 = vunpack.c.h.b16 %v349
        %v730 = vunpack.c.l.b16 %v350
        %v731 = vunpack.c.h.b16 %v350
        %v732 = vunpack.c.l.b16 %v351
        %v733 = vunpack.c.h.b16 %v351
        %v734 = vunpack.c.l.b16 %v352
        %v735 = vunpack.c.h.b16 %v352
        %v736 = vunpack.c.l.b16 %v353
        %v737 = vunpack.c.h.b16 %v353
        %v738 = vunpack.c.l.b16 %v354
        %v739 = vunpack.c.h.b16 %v354
        %v740 = vunpack.c.l.b16 %v355
        %v741 = vunpack.c.h.b16 %v355
        %v742 = vunpack.c.l.b16 %v356
        %v743 = vunpack.c.h.b16 %v356
        %v744 = vunpack.c.l.b16 %v357
        %v745 = vunpack.c.h.b16 %v357
        %v746 = vunpack.c.l.b16 %v358
        %v747 = vunpack.c.h.b16 %v358
        %v748 = vunpack.c.l.b16 %v359
        %v749 = vunpack.c.h.b16 %v359
        %v750 = vunpack.c.l.b16 %v360
        %v751 = vunpack.c.h.b16 %v360
        %v752 = vunpack.c.l.b16 %v361
        %v753 = vunpack.c.h.b16 %v361
        %v754 = vunpack.c.l.b16 %v362
        %v755 = vunpack.c.h.b16 %v362
        %v756 = vunpack.c.l.b16 %v363
        %v757 = vunpack.c.h.b16 %v363
        %v758 = vunpack.c.l.b16 %v364
        %v759 = vunpack.c.h.b16 %v364
        %v760 = vunpack.c.l.b16 %v365
        %v761 = vunpack.c.h.b16 %v365
        %v762 = vunpack.c.l.b16 %v366
        %v763 = vunpack.c.h.b16 %v366
        %v764 = vunpack.c.l.b16 %v367
        %v765 = vunpack.c.h.b16 %v367
        %v766 = vunpack.c.l.b16 %v368
        %v767 = vunpack.c.h.b16 %v368
        %v768 = vunpack.c.l.b16 %v369
        %v769 = vunpack.c.h.b16 %v369
        %v770 = vunpack.c.l.b16 %v370
        %v771 = vunpack.c.h.b16 %v370
        %v772 = vunpack.c.l.b16 %v371
        %v773 = vunpack.c.h.b16 %v371
        %v774 = vunpack.c.l.b16 %v372
        %v775 = vunpack.c.h.b16 %v372
        %v776 = vunpack.c.l.b16 %v373
        %v777 = vunpack.c.h.b16 %v373
        %v778 = vunpack.c.l.b16 %v374
        %v779 = vunpack.c.h.b16 %v374
        %v780 = vunpack.c.l.b16 %v375
        %v781 = vunpack.c.h.b16 %v375
        %v782 = vunpack.c.l.b16 %v376
        %v783 = vunpack.c.h.b16 %v376
        %v784 = vunpack.c.l.b16 %v377
        %v785 = vunpack.c.h.b16 %v377
        %v786 = vunpack.c.l.b16 %v378
        %v787 = vunpack.c.h.b16 %v378
        %v788 = vunpack.c.l.b16 %v379
        %v789 = vunpack.c.h.b16 %v379
        %v790 = vunpack.c.l.b16 %v380
        %v791 = vunpack.c.h.b16 %v380
        %v792 = vunpack.c.l.b16 %v381
        %v793 = vunpack.c.h.b16 %v381
        %v794 = vunpack.c.l.b16 %v382
        %v795 = vunpack.c.h.b16 %v382
        %v796 = vunpack.c.l.b16 %v383
        %v797 = vunpack.c.h.b16 %v383
        %v798 = vunpack.c.l.b16 %v384
        %v799 = vunpack.c.h.b16 %v384
        %v800 = vunpack.c.l.b16 %v385
        %v801 = vunpack.c.h.b16 %v385
        %v802 = vunpack.c.l.b16 %v386
        %v803 = vunpack.c.h.b16 %v386
        %v804 = vunpack.c.l.b16 %v387
        %v805 = vunpack.c.h.b16 %v387
        %v806 = vunpack.c.l.b16 %v388
        %v807 = vunpack.c.h.b16 %v388
        %v808 = vunpack.c.l.b16 %v389
        %v809 = vunpack.c.h.b16 %v389
        %v810 = vunpack.c.l.b16 %v390
        %v811 = vunpack.c.h.b16 %v390
        %v812 = vunpack.c.l.b16 %v391
        %v813 = vunpack.c.h.b16 %v391
        %v814 = vunpack.c.l.b16 %v392
        %v815 = vunpack.c.h.b16 %v392
        %v816 = vunpack.c.l.b16 %v393
        %v817 = vunpack.c.h.b16 %v393
        %v818 = vpack.c.b16 %v566, %v562
        %v819 = vpack.c.b16 %v567, %v563
        %v820 = vpack.c.b16 %v568, %v564
        %v821 = vpack.c.b16 %v569, %v565
        %v822 = vpack.c.b16 %v574, %v570
        %v823 = vpack.c.b16 %v575, %v571
        %v824 = vpack.c.b16 %v576, %v572
        %v825 = vpack.c.b16 %v577, %v573
        %v826 = vpack.c.b16 %v582, %v578
        %v827 = vpack.c.b16 %v583, %v579
        %v828 = vpack.c.b16 %v584, %v580
        %v829 = vpack.c.b16 %v585, %v581
        %v830 = vpack.c.b16 %v590, %v586
        %v831 = vpack.c.b16 %v591, %v587
        %v832 = vpack.c.b16 %v592, %v588
        %v833 = vpack.c.b16 %v593, %v589
        %v834 = vpack.c.b16 %v598, %v594
        %v835 = vpack.c.b16 %v599, %v595
        %v836 = vpack.c.b16 %v600, %v596
        %v837 = vpack.c.b16 %v601, %v597
        %v838 = vpack.c.b16 %v606, %v602
        %v839 = vpack.c.b16 %v607, %v603
        %v840 = vpack.c.b16 %v608, %v604
        %v841 = vpack.c.b16 %v609, %v605
        %v842 = vpack.c.b16 %v614, %v610
        %v843 = vpack.c.b16 %v615, %v611
        %v844 = vpack.c.b16 %v616, %v612
        %v845 = vpack.c.b16 %v617, %v613
        %v846 = vpack.c.b16 %v622, %v618
        %v847 = vpack.c.b16 %v623, %v619
        %v848 = vpack.c.b16 %v624, %v620
        %v849 = vpack.c.b16 %v625, %v621
        %v850 = vpack.c.b16 %v630, %v626
        %v851 = vpack.c.b16 %v631, %v627
        %v852 = vpack.c.b16 %v632, %v628
        %v853 = vpack.c.b16 %v633, %v629
        %v854 = vpack.c.b16 %v638, %v634
        %v855 = vpack.c.b16 %v639, %v635
        %v856 = vpack.c.b16 %v640, %v636
        %v857 = vpack.c.b16 %v641, %v637
        %v858 = vpack.c.b16 %v646, %v642
        %v859 = vpack.c.b16 %v647, %v643
        %v860 = vpack.c.b16 %v648, %v644
        %v861 = vpack.c.b16 %v649, %v645
        %v862 = vpack.c.b16 %v654, %v650
        %v863 = vpack.c.b16 %v655, %v651
        %v864 = vpack.c.b16 %v656, %v652
        %v865 = vpack.c.b16 %v657, %v653
        %v866 = vpack.c.b16 %v662, %v658
        %v867 = vpack.c.b16 %v663, %v659
        %v868 = vpack.c.b16 %v664, %v660
        %v869 = vpack.c.b16 %v665, %v661
        %v870 = vpack.c.b16 %v670, %v666
        %v871 = vpack.c.b16 %v671, %v667
        %v872 = vpack.c.b16 %v672, %v668
        %v873 = vpack.c.b16 %v673, %v669
        %v874 = vpack.c.b16 %v678, %v674
        %v875 = vpack.c.b16 %v679, %v675
        %v876 = vpack.c.b16 %v680, %v676
        %v877 = vpack.c.b16 %v681, %v677
        %v878 = vpack.c.b16 %v686, %v682
        %v879 = vpack.c.b16 %v687, %v683
        %v880 = vpack.c.b16 %v688, %v684
        %v881 = vpack.c.b16 %v689, %v685
        %v882 = vpack.c.b16 %v694, %v690
        %v883 = vpack.c.b16 %v695, %v691
        %v884 = vpack.c.b16 %v696, %v692
        %v885 = vpack.c.b16 %v697, %v693
        %v886 = vpack.c.b16 %v702, %v698
        %v887 = vpack.c.b16 %v703, %v699
        %v888 = vpack.c.b16 %v704, %v700
        %v889 = vpack.c.b16 %v705, %v701
        %v890 = vpack.c.b16 %v710, %v706
        %v891 = vpack.c.b16 %v711, %v707
        %v892 = vpack.c.b16 %v712, %v708
        %v893 = vpack.c.b16 %v713, %v709
        %v894 = vpack.c.b16 %v718, %v714
        %v895 = vpack.c.b16 %v719, %v715
        %v896 = vpack.c.b16 %v720, %v716
        %v897 = vpack.c.b16 %v721, %v717
        %v898 = vpack.c.b16 %v726, %v722
        %v899 = vpack.c.b16 %v727, %v723
        %v900 = vpack.c.b16 %v728, %v724
        %v901 = vpack.c.b16 %v729, %v725
        %v902 = vpack.c.b16 %v734, %v730
        %v903 = vpack.c.b16 %v735, %v731
        %v904 = vpack.c.b16 %v736, %v732
        %v905 = vpack.c.b16 %v737, %v733
        %v906 = vpack.c.b16 %v742, %v738
        %v907 = vpack.c.b16 %v743, %v739
        %v908 = vpack.c.b16 %v744, %v740
        %v909 = vpack.c.b16 %v745, %v741
        %v910 = vpack.c.b16 %v750, %v746
        %v911 = vpack.c.b16 %v751, %v747
        %v912 = vpack.c.b16 %v752, %v748
        %v913 = vpack.c.b16 %v753, %v749
        %v914 = vpack.c.b16 %v758, %v754
        %v915 = vpack.c.b16 %v759, %v755
        %v916 = vpack.c.b16 %v760, %v756
        %v917 = vpack.c.b16 %v761, %v757
        %v918 = vpack.c.b16 %v766, %v762
        %v919 = vpack.c.b16 %v767, %v763
        %v920 = vpack.c.b16 %v768, %v764
        %v921 = vpack.c.b16 %v769, %v765
        %v922 = vpack.c.b16 %v774, %v770
        %v923 = vpack.c.b16 %v775, %v771
        %v924 = vpack.c.b16 %v776, %v772
        %v925 = vpack.c.b16 %v777, %v773
        %v926 = vpack.c.b16 %v782, %v778
        %v927 = vpack.c.b16 %v783, %v779
        %v928 = vpack.c.b16 %v784, %v780
        %v929 = vpack.c.b16 %v785, %v781
        %v930 = vpack.c.b16 %v790, %v786
        %v931 = vpack.c.b16 %v791, %v787
        %v932 = vpack.c.b16 %v792, %v788
        %v933 = vpack.c.b16 %v793, %v789
        %v934 = vpack.c.b16 %v798, %v794
        %v935 = vpack.c.b16 %v799, %v795
        %v936 = vpack.c.b16 %v800, %v796
        %v937 = vpack.c.b16 %v801, %v797
        %v938 = vpack.c.b16 %v806, %v802
        %v939 = vpack.c.b16 %v807, %v803
        %v940 = vpack.c.b16 %v808, %v804
        %v941 = vpack.c.b16 %v809, %v805
        %v942 = vpack.c.b16 %v814, %v810
        %v943 = vpack.c.b16 %v815, %v811
        %v944 = vpack.c.b16 %v816, %v812
        %v945 = vpack.c.b16 %v817, %v813
        %1074 = vmatprep.subr.bf16.mxu0 %v819
        %1075 = vmatpush1.bf16.msra.mxu0 %v818
        %1076 = vmatprep.subr.bf16.mxu0 %v823
        %1077 = vmatpush1.bf16.msra.mxu0 %v822
        %1078 = vmatprep.subr.bf16.mxu0 %v827
        %1079 = vmatpush1.bf16.msra.mxu0 %v826
        %1080 = vmatprep.subr.bf16.mxu0 %v831
        %1081 = vmatpush1.bf16.msra.mxu0 %v830
        %1082 = vmatprep.subr.bf16.mxu0 %v835
        %1083 = vmatpush1.bf16.msra.mxu0 %v834
        %1084 = vmatprep.subr.bf16.mxu0 %v839
        %1085 = vmatpush1.bf16.msra.mxu0 %v838
        %1086 = vmatprep.subr.bf16.mxu0 %v843
        %1087 = vmatpush1.bf16.msra.mxu0 %v842
        %1088 = vmatprep.subr.bf16.mxu0 %v847
        %1089 = vmatpush1.bf16.msra.mxu0 %v846
        %1090 = vmatprep.subr.bf16.mxu0 %v851
        %1091 = vmatpush1.bf16.msra.mxu0 %v850
        %1092 = vmatprep.subr.bf16.mxu0 %v855
        %1093 = vmatpush1.bf16.msra.mxu0 %v854
        %1094 = vmatprep.subr.bf16.mxu0 %v859
        %1095 = vmatpush1.bf16.msra.mxu0 %v858
        %1096 = vmatprep.subr.bf16.mxu0 %v863
        %1097 = vmatpush1.bf16.msra.mxu0 %v862
        %1098 = vmatprep.subr.bf16.mxu0 %v867
        %1099 = vmatpush1.bf16.msra.mxu0 %v866
        %1100 = vmatprep.subr.bf16.mxu0 %v871
        %1101 = vmatpush1.bf16.msra.mxu0 %v870
        %1102 = vmatprep.subr.bf16.mxu0 %v875
        %1103 = vmatpush1.bf16.msra.mxu0 %v874
        %1104 = vmatprep.subr.bf16.mxu0 %v879
        %1105 = vmatpush1.bf16.msra.mxu0 %v878
        %1106 = vmatprep.mubr.bf16.mxu0 %v419
        %1107 = vmatmul.mubr.bf16.gmra.mrb[0].mxu0 %v418
        %v1108 = vpop.f32.mrb[0].mxu0
        %v1109 = vadd.f32 0.0, %v1108
        %v1110 = vpop.f32.mrb[0].mxu0
        %v1111 = vadd.f32 0.0, %v1110
        %v1112 = vpop.f32.mrb[0].mxu0
        %v1113 = vadd.f32 0.0, %v1112
        %v1114 = vpop.f32.mrb[0].mxu0
        %v1115 = vadd.f32 0.0, %v1114
        %1116 = vmatprep.mubr.bf16.mxu0 %v423
        %1117 = vmatmul.mubr.bf16.gmra.mrb[0].mxu0 %v422
        %v1118 = vpop.f32.mrb[0].mxu0
        %v1119 = vadd.f32 0.0, %v1118
        %v1120 = vpop.f32.mrb[0].mxu0
        %v1121 = vadd.f32 0.0, %v1120
        %v1122 = vpop.f32.mrb[0].mxu0
        %v1123 = vadd.f32 0.0, %v1122
        %v1124 = vpop.f32.mrb[0].mxu0
        %v1125 = vadd.f32 0.0, %v1124
        %1126 = vdwg.mxu0
        %1127 = vmatprep.subr.bf16.mxu0 %v883
        %1128 = vmatpush1.bf16.msra.mxu0 %v882
        %1129 = vmatprep.subr.bf16.mxu0 %v887
        %1130 = vmatpush1.bf16.msra.mxu0 %v886
        %1131 = vmatprep.subr.bf16.mxu0 %v891
        %1132 = vmatpush1.bf16.msra.mxu0 %v890
        %1133 = vmatprep.subr.bf16.mxu0 %v895
        %1134 = vmatpush1.bf16.msra.mxu0 %v894
        %1135 = vmatprep.subr.bf16.mxu0 %v899
        %1136 = vmatpush1.bf16.msra.mxu0 %v898
        %1137 = vmatprep.subr.bf16.mxu0 %v903
        %1138 = vmatpush1.bf16.msra.mxu0 %v902
        %1139 = vmatprep.subr.bf16.mxu0 %v907
        %1140 = vmatpush1.bf16.msra.mxu0 %v906
        %1141 = vmatprep.subr.bf16.mxu0 %v911
        %1142 = vmatpush1.bf16.msra.mxu0 %v910
        %1143 = vmatprep.subr.bf16.mxu0 %v915
        %1144 = vmatpush1.bf16.msra.mxu0 %v914
        %1145 = vmatprep.subr.bf16.mxu0 %v919
        %1146 = vmatpush1.bf16.msra.mxu0 %v918
        %1147 = vmatprep.subr.bf16.mxu0 %v923
        %1148 = vmatpush1.bf16.msra.mxu0 %v922
        %1149 = vmatprep.subr.bf16.mxu0 %v927
        %1150 = vmatpush1.bf16.msra.mxu0 %v926
        %1151 = vmatprep.subr.bf16.mxu0 %v931
        %1152 = vmatpush1.bf16.msra.mxu0 %v930
        %1153 = vmatprep.subr.bf16.mxu0 %v935
        %1154 = vmatpush1.bf16.msra.mxu0 %v934
        %1155 = vmatprep.subr.bf16.mxu0 %v939
        %1156 = vmatpush1.bf16.msra.mxu0 %v938
        %1157 = vmatprep.subr.bf16.mxu0 %v943
        %1158 = vmatpush1.bf16.msra.mxu0 %v942
        %1159 = vmatprep.mubr.bf16.mxu0 %v421
        %1160 = vmatmul.mubr.bf16.gmra.mrb[0].mxu0 %v420
        %v1161 = vpop.f32.mrb[0].mxu0
        %v1162 = vadd.f32 %v1109, %v1161
        %v1163 = vpop.f32.mrb[0].mxu0
        %v1164 = vadd.f32 %v1111, %v1163
        %v1165 = vpop.f32.mrb[0].mxu0
        %v1166 = vadd.f32 %v1113, %v1165
        %v1167 = vpop.f32.mrb[0].mxu0
        %v1168 = vadd.f32 %v1115, %v1167
        %1169 = vmatprep.mubr.bf16.mxu0 %v425
        %1170 = vmatmul.mubr.bf16.gmra.mrb[0].mxu0 %v424
        %v1171 = vpop.f32.mrb[0].mxu0
        %v1172 = vadd.f32 %v1119, %v1171
        %v1173 = vpop.f32.mrb[0].mxu0
        %v1174 = vadd.f32 %v1121, %v1173
        %v1175 = vpop.f32.mrb[0].mxu0
        %v1176 = vadd.f32 %v1123, %v1175
        %v1177 = vpop.f32.mrb[0].mxu0
        %v1178 = vadd.f32 %v1125, %v1177
        %1179 = vdwg.mxu0
        %1180 = vmatprep.subr.bf16.mxu0 %v821
        %1181 = vmatpush1.bf16.msra.mxu0 %v820
        %1182 = vmatprep.subr.bf16.mxu0 %v825
        %1183 = vmatpush1.bf16.msra.mxu0 %v824
        %1184 = vmatprep.subr.bf16.mxu0 %v829
        %1185 = vmatpush1.bf16.msra.mxu0 %v828
        %1186 = vmatprep.subr.bf16.mxu0 %v833
        %1187 = vmatpush1.bf16.msra.mxu0 %v832
        %1188 = vmatprep.subr.bf16.mxu0 %v837
        %1189 = vmatpush1.bf16.msra.mxu0 %v836
        %1190 = vmatprep.subr.bf16.mxu0 %v841
        %1191 = vmatpush1.bf16.msra.mxu0 %v840
        %1192 = vmatprep.subr.bf16.mxu0 %v845
        %1193 = vmatpush1.bf16.msra.mxu0 %v844
        %1194 = vmatprep.subr.bf16.mxu0 %v849
        %1195 = vmatpush1.bf16.msra.mxu0 %v848
        %1196 = vmatprep.subr.bf16.mxu0 %v853
        %1197 = vmatpush1.bf16.msra.mxu0 %v852
        %1198 = vmatprep.subr.bf16.mxu0 %v857
        %1199 = vmatpush1.bf16.msra.mxu0 %v856
        %1200 = vmatprep.subr.bf16.mxu0 %v861
        %1201 = vmatpush1.bf16.msra.mxu0 %v860
        %1202 = vmatprep.subr.bf16.mxu0 %v865
        %1203 = vmatpush1.bf16.msra.mxu0 %v864
        %1204 = vmatprep.subr.bf16.mxu0 %v869
        %1205 = vmatpush1.bf16.msra.mxu0 %v868
        %1206 = vmatprep.subr.bf16.mxu0 %v873
        %1207 = vmatpush1.bf16.msra.mxu0 %v872
        %1208 = vmatprep.subr.bf16.mxu0 %v877
        %1209 = vmatpush1.bf16.msra.mxu0 %v876
        %1210 = vmatprep.subr.bf16.mxu0 %v881
        %1211 = vmatpush1.bf16.msra.mxu0 %v880
        %1212 = vmatprep.mubr.bf16.mxu0 %v419
        %1213 = vmatmul.mubr.bf16.gmra.mrb[0].mxu0 %v418
        %v1214 = vpop.f32.mrb[0].mxu0
        %v1215 = vadd.f32 0.0, %v1214
        %v1216 = vpop.f32.mrb[0].mxu0
        %v1217 = vadd.f32 0.0, %v1216
        %v1218 = vpop.f32.mrb[0].mxu0
        %v1219 = vadd.f32 0.0, %v1218
        %v1220 = vpop.f32.mrb[0].mxu0
        %v1221 = vadd.f32 0.0, %v1220
        %1222 = vmatprep.mubr.bf16.mxu0 %v423
        %1223 = vmatmul.mubr.bf16.gmra.mrb[0].mxu0 %v422
        %v1224 = vpop.f32.mrb[0].mxu0
        %v1225 = vadd.f32 0.0, %v1224
        %v1226 = vpop.f32.mrb[0].mxu0
        %v1227 = vadd.f32 0.0, %v1226
        %v1228 = vpop.f32.mrb[0].mxu0
        %v1229 = vadd.f32 0.0, %v1228
        %v1230 = vpop.f32.mrb[0].mxu0
        %v1231 = vadd.f32 0.0, %v1230
        %1232 = vdwg.mxu0
        %1233 = vmatprep.subr.bf16.mxu0 %v885
        %1234 = vmatpush1.bf16.msra.mxu0 %v884
        %1235 = vmatprep.subr.bf16.mxu0 %v889
        %1236 = vmatpush1.bf16.msra.mxu0 %v888
        %1237 = vmatprep.subr.bf16.mxu0 %v893
        %1238 = vmatpush1.bf16.msra.mxu0 %v892
        %1239 = vmatprep.subr.bf16.mxu0 %v897
        %1240 = vmatpush1.bf16.msra.mxu0 %v896
        %1241 = vmatprep.subr.bf16.mxu0 %v901
        %1242 = vmatpush1.bf16.msra.mxu0 %v900
        %1243 = vmatprep.subr.bf16.mxu0 %v905
        %1244 = vmatpush1.bf16.msra.mxu0 %v904
        %1245 = vmatprep.subr.bf16.mxu0 %v909
        %1246 = vmatpush1.bf16.msra.mxu0 %v908
        %1247 = vmatprep.subr.bf16.mxu0 %v913
        %1248 = vmatpush1.bf16.msra.mxu0 %v912
        %1249 = vmatprep.subr.bf16.mxu0 %v917
        %1250 = vmatpush1.bf16.msra.mxu0 %v916
        %1251 = vmatprep.subr.bf16.mxu0 %v921
        %1252 = vmatpush1.bf16.msra.mxu0 %v920
        %1253 = vmatprep.subr.bf16.mxu0 %v925
        %1254 = vmatpush1.bf16.msra.mxu0 %v924
        %1255 = vmatprep.subr.bf16.mxu0 %v929
        %1256 = vmatpush1.bf16.msra.mxu0 %v928
        %1257 = vmatprep.subr.bf16.mxu0 %v933
        %1258 = vmatpush1.bf16.msra.mxu0 %v932
        %1259 = vmatprep.subr.bf16.mxu0 %v937
        %1260 = vmatpush1.bf16.msra.mxu0 %v936
        %1261 = vmatprep.subr.bf16.mxu0 %v941
        %1262 = vmatpush1.bf16.msra.mxu0 %v940
        %1263 = vmatprep.subr.bf16.mxu0 %v945
        %1264 = vmatpush1.bf16.msra.mxu0 %v944
        %1265 = vmatprep.mubr.bf16.mxu0 %v421
        %1266 = vmatmul.mubr.bf16.gmra.mrb[0].mxu0 %v420
        %v1267 = vpop.f32.mrb[0].mxu0
        %v1268 = vadd.f32 %v1215, %v1267
        %v1269 = vpop.f32.mrb[0].mxu0
        %v1270 = vadd.f32 %v1217, %v1269
        %v1271 = vpop.f32.mrb[0].mxu0
        %v1272 = vadd.f32 %v1219, %v1271
        %v1273 = vpop.f32.mrb[0].mxu0
        %v1274 = vadd.f32 %v1221, %v1273
        %1275 = vmatprep.mubr.bf16.mxu0 %v425
        %1276 = vmatmul.mubr.bf16.gmra.mrb[0].mxu0 %v424
        %v1277 = vpop.f32.mrb[0].mxu0
        %v1278 = vadd.f32 %v1225, %v1277
        %v1279 = vpop.f32.mrb[0].mxu0
        %v1280 = vadd.f32 %v1227, %v1279
        %v1281 = vpop.f32.mrb[0].mxu0
        %v1282 = vadd.f32 %v1229, %v1281
        %v1283 = vpop.f32.mrb[0].mxu0
        %v1284 = vadd.f32 %v1231, %v1283
        %1285 = vdwg.mxu0
        %v1286 = vadd.f32 %v242, %v1162
        %v1287 = vadd.f32 %v243, %v1164
        %v1288 = vadd.f32 %v244, %v1268
        %v1289 = vadd.f32 %v245, %v1270
        %v1290 = vadd.f32 %v246, %v1166
        %v1291 = vadd.f32 %v247, %v1168
        %v1292 = vadd.f32 %v248, %v1272
        %v1293 = vadd.f32 %v249, %v1274
        %v1294 = vadd.f32 %v250, %v1172
        %v1295 = vadd.f32 %v251, %v1174
        %v1296 = vadd.f32 %v252, %v1278
        %v1297 = vadd.f32 %v253, %v1280
        %v1298 = vadd.f32 %v254, %v1176
        %v1299 = vadd.f32 %v255, %v1178
        %v1300 = vadd.f32 %v256, %v1282
        %v1301 = vadd.f32 %v257, %v1284
        %1302 = vst [vmem:[#allocation2] sm:$0xff] %v1286
        %1303 = vst [vmem:[#allocation2 + $0x8] sm:$0xff] %v1287
        %1304 = vst [vmem:[#allocation2 + $0x10] sm:$0xff] %v1288
        %1305 = vst [vmem:[#allocation2 + $0x18] sm:$0xff] %v1289
        %1306 = vst [vmem:[#allocation2 + $0x20] sm:$0xff] %v1290
        %1307 = vst [vmem:[#allocation2 + $0x28] sm:$0xff] %v1291
        %1308 = vst [vmem:[#allocation2 + $0x30] sm:$0xff] %v1292
        %1309 = vst [vmem:[#allocation2 + $0x38] sm:$0xff] %v1293
        %1310 = vst [vmem:[#allocation2 + $0x40] sm:$0xff] %v1294
        %1311 = vst [vmem:[#allocation2 + $0x48] sm:$0xff] %v1295
        %1312 = vst [vmem:[#allocation2 + $0x50] sm:$0xff] %v1296
        %1313 = vst [vmem:[#allocation2 + $0x58] sm:$0xff] %v1297
        %1314 = vst [vmem:[#allocation2 + $0x60] sm:$0xff] %v1298
        %1315 = vst [vmem:[#allocation2 + $0x68] sm:$0xff] %v1299
        %1316 = vst [vmem:[#allocation2 + $0x70] sm:$0xff] %v1300
        %1317 = vst [vmem:[#allocation2 + $0x78] sm:$0xff] %v1301
        // Predicated region
        $region41: #{tpu_custom_call.1} parent=27 // pred_check
          %p1318 = pneg %p222
        $region42: #{tpu_custom_call.1} parent=27 // pred_check_branch
          %1320 = sbr.rel (%p1318) target = $region44
        $region43: #{tpu_custom_call.1} parent=27 // pred_region
          %v1321 = vld [vmem:[#allocation2] sm:$0xff]
          %v1322 = vld [vmem:[#allocation2 + $0x8] sm:$0xff]
          %v1323 = vld [vmem:[#allocation2 + $0x10] sm:$0xff]
          %v1324 = vld [vmem:[#allocation2 + $0x18] sm:$0xff]
          %v1325 = vld [vmem:[#allocation2 + $0x20] sm:$0xff]
          %v1326 = vld [vmem:[#allocation2 + $0x28] sm:$0xff]
          %v1327 = vld [vmem:[#allocation2 + $0x30] sm:$0xff]
          %v1328 = vld [vmem:[#allocation2 + $0x38] sm:$0xff]
          %v1329 = vld [vmem:[#allocation2 + $0x40] sm:$0xff]
          %v1330 = vld [vmem:[#allocation2 + $0x48] sm:$0xff]
          %v1331 = vld [vmem:[#allocation2 + $0x50] sm:$0xff]
          %v1332 = vld [vmem:[#allocation2 + $0x58] sm:$0xff]
          %v1333 = vld [vmem:[#allocation2 + $0x60] sm:$0xff]
          %v1334 = vld [vmem:[#allocation2 + $0x68] sm:$0xff]
          %v1335 = vld [vmem:[#allocation2 + $0x70] sm:$0xff]
          %v1336 = vld [vmem:[#allocation2 + $0x78] sm:$0xff]
          %v1337 = vpack.c.bf16 %v1325, %v1321
          %v1338 = vpack.c.bf16 %v1326, %v1322
          %v1339 = vpack.c.bf16 %v1327, %v1323
          %v1340 = vpack.c.bf16 %v1328, %v1324
          %v1341 = vpack.c.bf16 %v1333, %v1329
          %v1342 = vpack.c.bf16 %v1334, %v1330
          %v1343 = vpack.c.bf16 %v1335, %v1331
          %v1344 = vpack.c.bf16 %v1336, %v1332
          %v1353 = vunpack.c.l.b16 %v1337
          %v1354 = vunpack.c.l.b16 %v1338
          %v1355 = vunpack.c.l.b16 %v1339
          %v1356 = vunpack.c.l.b16 %v1340
          %v1357 = vunpack.c.h.b16 %v1337
          %v1358 = vunpack.c.h.b16 %v1338
          %v1359 = vunpack.c.h.b16 %v1339
          %v1360 = vunpack.c.h.b16 %v1340
          %v1361 = vunpack.c.l.b16 %v1341
          %v1362 = vunpack.c.l.b16 %v1342
          %v1363 = vunpack.c.l.b16 %v1343
          %v1364 = vunpack.c.l.b16 %v1344
          %v1365 = vunpack.c.h.b16 %v1341
          %v1366 = vunpack.c.h.b16 %v1342
          %v1367 = vunpack.c.h.b16 %v1343
          %v1368 = vunpack.c.h.b16 %v1344
          %v1369 = vpack.c.b16 %v1354, %v1353
          %v1370 = vpack.c.b16 %v1356, %v1355
          %v1371 = vpack.c.b16 %v1358, %v1357
          %v1372 = vpack.c.b16 %v1360, %v1359
          %v1373 = vpack.c.b16 %v1362, %v1361
          %v1374 = vpack.c.b16 %v1364, %v1363
          %v1375 = vpack.c.b16 %v1366, %v1365
          %v1376 = vpack.c.b16 %v1368, %v1367
          %1385 = vst [vmem:[%s215] sm:$0xff] %v1369
          %1386 = vst [vmem:[%s215 + $0x8] sm:$0xff] %v1370
          %1387 = vst [vmem:[%s215 + $0x10] sm:$0xff] %v1371
          %1388 = vst [vmem:[%s215 + $0x18] sm:$0xff] %v1372
          %1389 = vst [vmem:[%s215 + $0x20] sm:$0xff] %v1373
          %1390 = vst [vmem:[%s215 + $0x28] sm:$0xff] %v1374
          %1391 = vst [vmem:[%s215 + $0x30] sm:$0xff] %v1375
          %1392 = vst [vmem:[%s215 + $0x38] sm:$0xff] %v1376
        $region44: #{tpu_custom_call.1} parent=27 // pred_fallthru
          _
        %s1393 = sand.u32 %s105, 1
        %s1394 = scalar_lea.sflag [#allocation5], %s1393
        %s1395 = sand.u32 %s105, 1
        %s1396 = smul.addr %s1395, 64
        %s1397 = scalar_lea.vmem [#allocation8], %s1396
        // Predicated region
        $region45: #{tpu_custom_call.1} parent=27 // pred_check
          %p1398 = pneg %p115
        $region46: #{tpu_custom_call.1} parent=27 // pred_check_branch
          %1400 = sbr.rel (%p1398) target = $region48
        $region47: #{tpu_custom_call.1} parent=27 // pred_region
          %s1401 = smul.u32 4, %s25
          %s1402 = smul.u32 4, %s26
          %s1404 = ssub.s32 1024, 1024
          %1405 = vsyncadd %s1394, %s1404
          %s1406 = smul.addr %s1401, 8
          %s1407 = sadd.s32 %s1402, %s1406
          %s1408 = smul.addr %s1407, 64
          %s1409 = scalar_lea.hbm %s2, %s1408
          %s1410 = sshll.u32 %s1397, 4
          %s1411 = int_to_ptr.vmem [resolvable:$true] %s1410
          %1416 = dma.vmem_to_hbm [thread:$0]  %s1411, 1024, %s1409, %s1394, 256, 512, 16
        $region48: #{tpu_custom_call.1} parent=27 // pred_fallthru
          _
      $region28: #{tpu_custom_call.1} parent=5 // pred_fallthru
        _
      %p1417 = scmp.le.s32.totalorder 2, %s15
      // Predicated region
      $region49: #{tpu_custom_call.1} parent=5 // pred_check
        %p1418 = pneg %p1417
      $region50: #{tpu_custom_call.1} parent=5 // pred_check_branch
        %1420 = sbr.rel (%p1418) target = $region52
      $region51: #{tpu_custom_call.1} parent=5 // pred_region
        %s1421 = ssub.s32 %s15, 2
        // Predicated region
        $region53: #{tpu_custom_call.1} parent=51 // pred_check
          %p1422 = pneg %p121
        $region54: #{tpu_custom_call.1} parent=51 // pred_check_branch
          %1424 = sbr.rel (%p1422) target = $region56
        $region55: #{tpu_custom_call.1} parent=51 // pred_region
          %s1425 = sand.u32 %s106, 1
          %s1426 = scalar_lea.sflag [#allocation5], %s1425
          %s1427 = sand.u32 %s106, 1
          %s1428 = smul.addr %s1427, 64
          %s1429 = scalar_lea.vmem [#allocation8], %s1428
          %1430 = dma.done %s1426, 1024
        $region56: #{tpu_custom_call.1} parent=51 // pred_fallthru
          _
      $region52: #{tpu_custom_call.1} parent=5 // pred_fallthru
        _
    $region6: #{tpu_custom_call.1} parent=1 // loop_footer
      %s19 = sadd.s32 1, %s15
    $region7: #{tpu_custom_call.1} parent=1 // loop_footer_branch
      %14 = sbr.rel target = $region3
    $region8: #{tpu_custom_call.1} parent=1 // loop_exit
      _
    %1431 = vsyncpa [#allocation4], 1
    %s1432 = scalar_lea.sflag [#allocation4], 1
    %1433 = vsyncpa %s1432, 1
    %1434 = vsyncpa [#allocation7], 1
    %s1435 = scalar_lea.sflag [#allocation7], 1
    %1436 = vsyncpa %s1435, 1
    %1437 = vsyncpa [#allocation5], 1
    %s1438 = scalar_lea.sflag [#allocation5], 1
    %1439 = vsyncpa %s1438, 1

</llo_original>
